<compile_context>
chip_gen: v5e
topology: v5e:2x2
jax: 0.10.0
libtpu: 0.0.40
codegen_flags: <defaults>
</compile_context>

<pallas_src>
import functools

import jax
import jax.numpy as jnp
from jax.experimental import pallas as pl
from jax.experimental.pallas import tpu as pltpu


def _round_up(v, m):
    return ((v + m - 1) // m) * m


def _global_model_kernel(nb_ref, eb_ref, x_ref, e_ref, u_ref,
                         w1x_ref, w1e_ref, w1u_ref, b1_ref, w2_ref, b2_ref,
                         out_ref, x_acc, e_acc, *, agg_dtype):
    k = pl.program_id(0)
    B = x_acc.shape[0]
    TN = x_ref.shape[0]
    TE = e_ref.shape[0]

    @pl.when(k == 0)
    def _init():
        x_acc[...] = jnp.zeros_like(x_acc)
        e_acc[...] = jnp.zeros_like(e_acc)

    # ---- nodes -> graphs: scatter_sum tile as one-hot matmul (MXU, f32 acc) ----
    gid_n = jax.lax.broadcasted_iota(jnp.int32, (B, TN), 0)          # [B, TN]
    mask_n = (gid_n == nb_ref[...]).astype(agg_dtype)                # exact 0/1
    x_acc[...] += jnp.dot(mask_n, x_ref[...].astype(agg_dtype),
                          preferred_element_type=jnp.float32)        # [B, Fn]

    # ---- edges -> graphs ----
    gid_e = jax.lax.broadcasted_iota(jnp.int32, (B, TE), 0)          # [B, TE]
    mask_e = (gid_e == eb_ref[...]).astype(agg_dtype)
    e_acc[...] += jnp.dot(mask_e, e_ref[...].astype(agg_dtype),
                          preferred_element_type=jnp.float32)        # [B, Fe]

    # ---- final step: global MLP on concat([x_aggr, e_aggr, u]) ----
    @pl.when(k == pl.num_programs(0) - 1)
    def _finalize():
        # W1 was split host-side in torch concat order, so concat@W1 == sum of 3 matmuls.
        h = (jnp.dot(x_acc[...], w1x_ref[...], preferred_element_type=jnp.float32)
             + jnp.dot(e_acc[...], w1e_ref[...], preferred_element_type=jnp.float32)
             + jnp.dot(u_ref[...], w1u_ref[...], preferred_element_type=jnp.float32)
             + b1_ref[...])
        h = jnp.maximum(h, 0.0)                                       # ReLU
        o = jnp.dot(h, w2_ref[...], preferred_element_type=jnp.float32) + b2_ref[...]
        out_ref[...] = jnp.maximum(o, 0.0)                            # activate_final=True


def global_model_forward(x, edge_attr, u, node_batch, edge_src, params,
                         *, max_tile_rows=2048, aggregate_in_bf16=True):
    """Pallas implementation of GlobalModel.forward; returns new u [B, n_out] f32."""
    N, Fn = x.shape
    E, Fe = edge_attr.shape
    B, Gin = u.shape
    L = params["w1"].shape[1]
    n_out = params["w2"].shape[1]
    assert params["w1"].shape[0] == Fn + Fe + Gin

    f32 = jnp.float32
    x = x.astype(f32)
    edge_attr = edge_attr.astype(f32)
    u = u.astype(f32)

    # ---- padded / tiled sizes (lane-dense output, 128-multiple row tiles) ----
    B_pad = _round_up(B, 8)
    L_pad = _round_up(L, 128)
    O_pad = _round_up(n_out, 128)
    TN = min(max_tile_rows, _round_up(max(N, 1), 128))
    TE = min(max_tile_rows, _round_up(max(E, 1), 128))
    K = max(pl.cdiv(max(N, 1), TN), pl.cdiv(max(E, 1), TE))
    N_pad = K * TN
    E_pad = K * TE

    # ---- host-side glue + padding (padded rows: id=B_pad, zero features) ----
    nb = node_batch.astype(jnp.int32)
    eb = nb[edge_src]                                  # batch[edge_index[0]]
    nb_p = jnp.full((1, N_pad), B_pad, jnp.int32).at[0, :N].set(nb)
    eb_p = jnp.full((1, E_pad), B_pad, jnp.int32).at[0, :E].set(eb)
    x_p = jnp.zeros((N_pad, Fn), f32).at[:N].set(x)
    e_p = jnp.zeros((E_pad, Fe), f32).at[:E].set(edge_attr)
    u_p = jnp.zeros((B_pad, Gin), f32).at[:B].set(u)

    w1 = params["w1"].astype(f32)
    w1x = jnp.zeros((Fn, L_pad), f32).at[:, :L].set(w1[:Fn])
    w1e = jnp.zeros((Fe, L_pad), f32).at[:, :L].set(w1[Fn:Fn + Fe])
    w1u = jnp.zeros((Gin, L_pad), f32).at[:, :L].set(w1[Fn + Fe:])
    b1 = jnp.zeros((1, L_pad), f32).at[0, :L].set(params["b1"].astype(f32))
    w2 = jnp.zeros((L_pad, O_pad), f32).at[:L, :n_out].set(params["w2"].astype(f32))
    b2 = jnp.zeros((1, O_pad), f32).at[0, :n_out].set(params["b2"].astype(f32))

    agg_dtype = jnp.bfloat16 if aggregate_in_bf16 else jnp.float32

    # ---- specs ----
    depth = 3 if K >= 3 else None          # deeper pipelining only when it can help

    def tiled(block, index_map):
        if depth is None:
            return pl.BlockSpec(block, index_map)
        return pl.BlockSpec(block, index_map, pipeline_mode=pl.Buffered(depth))

    def const(shape):
        return pl.BlockSpec(shape, lambda k: (0,) * len(shape))

    in_specs = [
        tiled((1, TN), lambda k: (0, k)),              # node graph ids
        tiled((1, TE), lambda k: (0, k)),              # edge graph ids
        tiled((TN, Fn), lambda k: (k, 0)),             # x
        tiled((TE, Fe), lambda k: (k, 0)),             # edge_attr
        const((B_pad, Gin)),                           # u (resident)
        const((Fn, L_pad)), const((Fe, L_pad)), const((Gin, L_pad)),   # W1 split
        const((1, L_pad)),                             # b1
        const((L_pad, O_pad)), const((1, O_pad)),      # W2, b2
    ]

    inputs = (nb_p, eb_p, x_p, e_p, u_p, w1x, w1e, w1u, b1, w2, b2)
    flops = (2 * B_pad * N_pad * Fn + 2 * B_pad * E_pad * Fe
             + 2 * B_pad * (Fn + Fe + Gin) * L_pad + 2 * B_pad * L_pad * O_pad)
    bytes_accessed = (sum(int(a.size) * a.dtype.itemsize for a in inputs)
                      + B_pad * O_pad * 4)

    out = pl.pallas_call(
        functools.partial(_global_model_kernel, agg_dtype=agg_dtype),
        out_shape=jax.ShapeDtypeStruct((B_pad, O_pad), f32),
        grid_spec=pltpu.PrefetchScalarGridSpec(
            num_scalar_prefetch=0,
            grid=(K,),
            in_specs=in_specs,
            out_specs=pl.BlockSpec((B_pad, O_pad), lambda k: (0, 0)),
            scratch_shapes=[pltpu.VMEM((B_pad, Fn), f32),     # x_aggr accumulator
                            pltpu.VMEM((B_pad, Fe), f32)]),   # e_aggr accumulator
        compiler_params=pltpu.CompilerParams(
            dimension_semantics=("arbitrary",),
            vmem_limit_bytes=64 * 1024 * 1024),
        cost_estimate=pl.CostEstimate(flops=flops, transcendentals=0,
                                      bytes_accessed=bytes_accessed),
    )(*inputs)

    return out[:B, :n_out]


def _reference(x, edge_attr, u, node_batch, edge_src, params):
    B = u.shape[0]
    x_aggr = jax.ops.segment_sum(x, node_batch, num_segments=B)
    e_aggr = jax.ops.segment_sum(edge_attr, node_batch[edge_src], num_segments=B)
    cat = jnp.concatenate([x_aggr, e_aggr, u], axis=1)
    h = jnp.maximum(cat @ params["w1"] + params["b1"], 0.0)
    return jnp.maximum(h @ params["w2"] + params["b2"], 0.0)


def _make_problem(key, B, N, E, Fn, Fe, Gin, latent, n_out):
    k = jax.random.split(key, 9)
    x = jax.random.normal(k[0], (N, Fn), jnp.float32)
    edge_attr = jax.random.normal(k[1], (E, Fe), jnp.float32)
    u = jax.random.normal(k[2], (B, Gin), jnp.float32)
    node_batch = jnp.sort(jax.random.randint(k[3], (N,), 0, B, jnp.int32))
    edge_src = jax.random.randint(k[4], (E,), 0, N, jnp.int32)
    params = {
        "w1": 0.1 * jax.random.normal(k[5], (Fn + Fe + Gin, latent), jnp.float32),
        "b1": 0.1 * jax.random.normal(k[6], (latent,), jnp.float32),
        "w2": 0.1 * jax.random.normal(k[7], (latent, n_out), jnp.float32),
        "b2": 0.1 * jax.random.normal(k[8], (n_out,), jnp.float32),
    }
    return x, edge_attr, u, node_batch, edge_src, params


if __name__ == "__main__":
    key = jax.random.PRNGKey(0)
    k_toy, k_med = jax.random.split(key)

    # ---- toy problem (matches module defaults, single grid step) ----
    Fn, Fe, Gin, n_out = 5, 3, 4, 6
    x, e, u, nb, es, params = _make_problem(k_toy, B=2, N=8, E=10,
                                            Fn=Fn, Fe=Fe, Gin=Gin,
                                            latent=32, n_out=n_out)

    # exact f32 path vs exact reference
    out_f32 = jax.block_until_ready(
        global_model_forward(x, e, u, nb, es, params, aggregate_in_bf16=False))
    ref = _reference(x, e, u, nb, es, params)
    assert out_f32.shape == (2, n_out)
    assert jnp.allclose(out_f32, ref, atol=1e-4, rtol=1e-4)

    # bf16-aggregation path vs bf16-cast-matched reference (f32 accumulation)
    out_bf = jax.block_until_ready(
        global_model_forward(x, e, u, nb, es, params, aggregate_in_bf16=True))
    ref_bf = _reference(x.astype(jnp.bfloat16).astype(jnp.float32),
                        e.astype(jnp.bfloat16).astype(jnp.float32),
                        u, nb, es, params)
    assert jnp.allclose(out_bf, ref_bf, atol=1e-3, rtol=1e-3)

    # ---- medium problem: exercises multi-step reduction, padding, Buffered(3) ----
    x2, e2, u2, nb2, es2, params2 = _make_problem(k_med, B=3, N=700, E=1000,
                                                  Fn=Fn, Fe=Fe, Gin=Gin,
                                                  latent=128, n_out=n_out)
    out2 = jax.block_until_ready(
        global_model_forward(x2, e2, u2, nb2, es2, params2,
                             max_tile_rows=256, aggregate_in_bf16=True))
    ref2 = _reference(x2.astype(jnp.bfloat16).astype(jnp.float32),
                      e2.astype(jnp.bfloat16).astype(jnp.float32),
                      u2, nb2, es2, params2)
    assert out2.shape == (3, n_out)
    assert jnp.allclose(out2, ref2, atol=1e-2, rtol=1e-2)

    print("KERNEL_OK")
</pallas_src>

<mosaic_0001>
module attributes {stable_mosaic.version = 11 : i64} {
  func.func @_global_model_kernel(%arg0: i32, %arg1: memref<1x128xi32, #tpu.memory_space<vmem>>, %arg2: memref<1x128xi32, #tpu.memory_space<vmem>>, %arg3: memref<128x5xf32, #tpu.memory_space<vmem>>, %arg4: memref<128x3xf32, #tpu.memory_space<vmem>>, %arg5: memref<8x4xf32, #tpu.memory_space<vmem>>, %arg6: memref<5x128xf32, #tpu.memory_space<vmem>>, %arg7: memref<3x128xf32, #tpu.memory_space<vmem>>, %arg8: memref<4x128xf32, #tpu.memory_space<vmem>>, %arg9: memref<1x128xf32, #tpu.memory_space<vmem>>, %arg10: memref<128x128xf32, #tpu.memory_space<vmem>>, %arg11: memref<1x128xf32, #tpu.memory_space<vmem>>, %arg12: memref<8x128xf32, #tpu.memory_space<vmem>>, %arg13: memref<8x5xf32, #tpu.memory_space<vmem>>, %arg14: memref<8x3xf32, #tpu.memory_space<vmem>>) attributes {dimension_semantics = [#tpu.dimension_semantics<arbitrary>], iteration_bounds = array<i64: 1>, scalar_prefetch = 0 : i64, scratch_operands = 2 : i64, tpu.core_type = #tpu.core_type<tc>, window_params = [{transform_indices = @transform_0, window_bounds = array<i64: 1, 128>}, {transform_indices = @transform_1, window_bounds = array<i64: 1, 128>}, {transform_indices = @transform_2, window_bounds = array<i64: 128, 5>}, {transform_indices = @transform_3, window_bounds = array<i64: 128, 3>}, {pipeline_mode = #tpu.pipeline_mode<synchronous>, transform_indices = @transform_4, window_bounds = array<i64: 8, 4>}, {pipeline_mode = #tpu.pipeline_mode<synchronous>, transform_indices = @transform_5, window_bounds = array<i64: 5, 128>}, {pipeline_mode = #tpu.pipeline_mode<synchronous>, transform_indices = @transform_6, window_bounds = array<i64: 3, 128>}, {pipeline_mode = #tpu.pipeline_mode<synchronous>, transform_indices = @transform_7, window_bounds = array<i64: 4, 128>}, {pipeline_mode = #tpu.pipeline_mode<synchronous>, transform_indices = @transform_8, window_bounds = array<i64: 1, 128>}, {pipeline_mode = #tpu.pipeline_mode<synchronous>, transform_indices = @transform_9, window_bounds = array<i64: 128, 128>}, {pipeline_mode = #tpu.pipeline_mode<synchronous>, transform_indices = @transform_10, window_bounds = array<i64: 1, 128>}, {pipeline_mode = #tpu.pipeline_mode<synchronous>, transform_indices = @transform_11, window_bounds = array<i64: 8, 128>}]} {
    %c0_i32 = arith.constant 0 : i32
    %0 = arith.cmpi eq, %arg0, %c0_i32 : i32
    %1 = arith.extui %0 : i1 to i32
    %c0_i32_0 = arith.constant 0 : i32
    %2 = arith.cmpi ne, %1, %c0_i32_0 : i32
    scf.if %2 {
      %cst_19 = arith.constant 0.000000e+00 : f32
      %28 = vector.broadcast %cst_19 : f32 to vector<8x5xf32>
      %c0_20 = arith.constant 0 : index
      %c0_21 = arith.constant 0 : index
      %29 = vector.load %arg13[%c0_20, %c0_21] : memref<8x5xf32, #tpu.memory_space<vmem>>, vector<8x5xf32>
      tpu.vector_store %arg13[%c0_20, %c0_21], %28 {strides = array<i32>} : memref<8x5xf32, #tpu.memory_space<vmem>>, vector<8x5xf32>,
      %cst_22 = arith.constant 0.000000e+00 : f32
      %30 = vector.broadcast %cst_22 : f32 to vector<8x3xf32>
      %c0_23 = arith.constant 0 : index
      %c0_24 = arith.constant 0 : index
      %31 = vector.load %arg14[%c0_23, %c0_24] : memref<8x3xf32, #tpu.memory_space<vmem>>, vector<8x3xf32>
      tpu.vector_store %arg14[%c0_23, %c0_24], %30 {strides = array<i32>} : memref<8x3xf32, #tpu.memory_space<vmem>>, vector<8x3xf32>,
    } else {
    }
    %3 = tpu.iota {dimensions = array<i32: 0>} : vector<8x128xi32>
    %c0 = arith.constant 0 : index
    %c0_1 = arith.constant 0 : index
    %4 = vector.load %arg1[%c0, %c0_1] : memref<1x128xi32, #tpu.memory_space<vmem>>, vector<1x128xi32>
    %5 = vector.broadcast %4 : vector<1x128xi32> to vector<8x128xi32>
    %6 = arith.cmpi eq, %3, %5 : vector<8x128xi32>
    %7 = arith.extui %6 : vector<8x128xi1> to vector<8x128xi32>
    %8 = arith.sitofp %7 : vector<8x128xi32> to vector<8x128xf32>
    %c0_2 = arith.constant 0 : index
    %c0_3 = arith.constant 0 : index
    %9 = vector.load %arg13[%c0_2, %c0_3] : memref<8x5xf32, #tpu.memory_space<vmem>>, vector<8x5xf32>
    %c0_4 = arith.constant 0 : index
    %c0_5 = arith.constant 0 : index
    %10 = vector.load %arg3[%c0_4, %c0_5] : memref<128x5xf32, #tpu.memory_space<vmem>>, vector<128x5xf32>
    %cst = arith.constant dense<0.000000e+00> : vector<8x5xf32>
    %11 = tpu.matmul %8, %10, %cst {dimension_numbers = #tpu.dot_dimension_numbers<[1], [0], [0], [1], [0, 0, 1, 1], [], []>} : vector<8x128xf32>, vector<128x5xf32>, vector<8x5xf32> -> vector<8x5xf32>
    %12 = arith.addf %9, %11 : vector<8x5xf32>
    %c0_6 = arith.constant 0 : index
    %c0_7 = arith.constant 0 : index
    %13 = vector.load %arg13[%c0_6, %c0_7] : memref<8x5xf32, #tpu.memory_space<vmem>>, vector<8x5xf32>
    tpu.vector_store %arg13[%c0_6, %c0_7], %12 {strides = array<i32>} : memref<8x5xf32, #tpu.memory_space<vmem>>, vector<8x5xf32>,
    %14 = tpu.iota {dimensions = array<i32: 0>} : vector<8x128xi32>
    %c0_8 = arith.constant 0 : index
    %c0_9 = arith.constant 0 : index
    %15 = vector.load %arg2[%c0_8, %c0_9] : memref<1x128xi32, #tpu.memory_space<vmem>>, vector<1x128xi32>
    %16 = vector.broadcast %15 : vector<1x128xi32> to vector<8x128xi32>
    %17 = arith.cmpi eq, %14, %16 : vector<8x128xi32>
    %18 = arith.extui %17 : vector<8x128xi1> to vector<8x128xi32>
    %19 = arith.sitofp %18 : vector<8x128xi32> to vector<8x128xf32>
    %c0_10 = arith.constant 0 : index
    %c0_11 = arith.constant 0 : index
    %20 = vector.load %arg14[%c0_10, %c0_11] : memref<8x3xf32, #tpu.memory_space<vmem>>, vector<8x3xf32>
    %c0_12 = arith.constant 0 : index
    %c0_13 = arith.constant 0 : index
    %21 = vector.load %arg4[%c0_12, %c0_13] : memref<128x3xf32, #tpu.memory_space<vmem>>, vector<128x3xf32>
    %cst_14 = arith.constant dense<0.000000e+00> : vector<8x3xf32>
    %22 = tpu.matmul %19, %21, %cst_14 {dimension_numbers = #tpu.dot_dimension_numbers<[1], [0], [0], [1], [0, 0, 1, 1], [], []>} : vector<8x128xf32>, vector<128x3xf32>, vector<8x3xf32> -> vector<8x3xf32>
    %23 = arith.addf %20, %22 : vector<8x3xf32>
    %c0_15 = arith.constant 0 : index
    %c0_16 = arith.constant 0 : index
    %24 = vector.load %arg14[%c0_15, %c0_16] : memref<8x3xf32, #tpu.memory_space<vmem>>, vector<8x3xf32>
    tpu.vector_store %arg14[%c0_15, %c0_16], %23 {strides = array<i32>} : memref<8x3xf32, #tpu.memory_space<vmem>>, vector<8x3xf32>,
    %c0_i32_17 = arith.constant 0 : i32
    %25 = arith.cmpi eq, %arg0, %c0_i32_17 : i32
    %26 = arith.extui %25 : i1 to i32
    %c0_i32_18 = arith.constant 0 : i32
    %27 = arith.cmpi ne, %26, %c0_i32_18 : i32
    scf.if %27 {
      %c0_19 = arith.constant 0 : index
      %c0_20 = arith.constant 0 : index
      %28 = vector.load %arg13[%c0_19, %c0_20] : memref<8x5xf32, #tpu.memory_space<vmem>>, vector<8x5xf32>
      %c0_21 = arith.constant 0 : index
      %c0_22 = arith.constant 0 : index
      %29 = vector.load %arg6[%c0_21, %c0_22] : memref<5x128xf32, #tpu.memory_space<vmem>>, vector<5x128xf32>
      %cst_23 = arith.constant dense<0.000000e+00> : vector<8x128xf32>
      %30 = tpu.matmul %28, %29, %cst_23 {dimension_numbers = #tpu.dot_dimension_numbers<[1], [0], [0], [1], [0, 0, 1, 1], [], []>} : vector<8x5xf32>, vector<5x128xf32>, vector<8x128xf32> -> vector<8x128xf32>
      %c0_24 = arith.constant 0 : index
      %c0_25 = arith.constant 0 : index
      %31 = vector.load %arg14[%c0_24, %c0_25] : memref<8x3xf32, #tpu.memory_space<vmem>>, vector<8x3xf32>
      %c0_26 = arith.constant 0 : index
      %c0_27 = arith.constant 0 : index
      %32 = vector.load %arg7[%c0_26, %c0_27] : memref<3x128xf32, #tpu.memory_space<vmem>>, vector<3x128xf32>
      %cst_28 = arith.constant dense<0.000000e+00> : vector<8x128xf32>
      %33 = tpu.matmul %31, %32, %cst_28 {dimension_numbers = #tpu.dot_dimension_numbers<[1], [0], [0], [1], [0, 0, 1, 1], [], []>} : vector<8x3xf32>, vector<3x128xf32>, vector<8x128xf32> -> vector<8x128xf32>
      %34 = arith.addf %30, %33 : vector<8x128xf32>
      %c0_29 = arith.constant 0 : index
      %c0_30 = arith.constant 0 : index
      %35 = vector.load %arg5[%c0_29, %c0_30] : memref<8x4xf32, #tpu.memory_space<vmem>>, vector<8x4xf32>
      %c0_31 = arith.constant 0 : index
      %c0_32 = arith.constant 0 : index
      %36 = vector.load %arg8[%c0_31, %c0_32] : memref<4x128xf32, #tpu.memory_space<vmem>>, vector<4x128xf32>
      %cst_33 = arith.constant dense<0.000000e+00> : vector<8x128xf32>
      %37 = tpu.matmul %35, %36, %cst_33 {dimension_numbers = #tpu.dot_dimension_numbers<[1], [0], [0], [1], [0, 0, 1, 1], [], []>} : vector<8x4xf32>, vector<4x128xf32>, vector<8x128xf32> -> vector<8x128xf32>
      %38 = arith.addf %34, %37 : vector<8x128xf32>
      %c0_34 = arith.constant 0 : index
      %c0_35 = arith.constant 0 : index
      %39 = vector.load %arg9[%c0_34, %c0_35] : memref<1x128xf32, #tpu.memory_space<vmem>>, vector<1x128xf32>
      %40 = vector.broadcast %39 : vector<1x128xf32> to vector<8x128xf32>
      %41 = arith.addf %38, %40 : vector<8x128xf32>
      %cst_36 = arith.constant 0.000000e+00 : f32
      %42 = vector.broadcast %cst_36 : f32 to vector<8x128xf32>
      %43 = arith.maximumf %41, %42 : vector<8x128xf32>
      %c0_37 = arith.constant 0 : index
      %c0_38 = arith.constant 0 : index
      %44 = vector.load %arg10[%c0_37, %c0_38] : memref<128x128xf32, #tpu.memory_space<vmem>>, vector<128x128xf32>
      %cst_39 = arith.constant dense<0.000000e+00> : vector<8x128xf32>
      %45 = tpu.matmul %43, %44, %cst_39 {dimension_numbers = #tpu.dot_dimension_numbers<[1], [0], [0], [1], [0, 0, 1, 1], [], []>} : vector<8x128xf32>, vector<128x128xf32>, vector<8x128xf32> -> vector<8x128xf32>
      %c0_40 = arith.constant 0 : index
      %c0_41 = arith.constant 0 : index
      %46 = vector.load %arg11[%c0_40, %c0_41] : memref<1x128xf32, #tpu.memory_space<vmem>>, vector<1x128xf32>
      %47 = vector.broadcast %46 : vector<1x128xf32> to vector<8x128xf32>
      %48 = arith.addf %45, %47 : vector<8x128xf32>
      %cst_42 = arith.constant 0.000000e+00 : f32
      %49 = vector.broadcast %cst_42 : f32 to vector<8x128xf32>
      %50 = arith.maximumf %48, %49 : vector<8x128xf32>
      %c0_43 = arith.constant 0 : index
      %c0_44 = arith.constant 0 : index
      %51 = vector.load %arg12[%c0_43, %c0_44] : memref<8x128xf32, #tpu.memory_space<vmem>>, vector<8x128xf32>
      tpu.vector_store %arg12[%c0_43, %c0_44], %50 {strides = array<i32>} : memref<8x128xf32, #tpu.memory_space<vmem>>, vector<8x128xf32>,
    } else {
    }
    return
  }
  func.func @transform_0(%arg0: i32) -> (i32, i32) {
    %c0_i32 = arith.constant 0 : i32
    %c0_i32_0 = arith.constant 0 : i32
    return %c0_i32, %arg0 : i32, i32
  }
  func.func @transform_1(%arg0: i32) -> (i32, i32) {
    %c0_i32 = arith.constant 0 : i32
    %c0_i32_0 = arith.constant 0 : i32
    return %c0_i32, %arg0 : i32, i32
  }
  func.func @transform_2(%arg0: i32) -> (i32, i32) {
    %c0_i32 = arith.constant 0 : i32
    %c0_i32_0 = arith.constant 0 : i32
    return %arg0, %c0_i32 : i32, i32
  }
  func.func @transform_3(%arg0: i32) -> (i32, i32) {
    %c0_i32 = arith.constant 0 : i32
    %c0_i32_0 = arith.constant 0 : i32
    return %arg0, %c0_i32 : i32, i32
  }
  func.func @transform_4(%arg0: i32) -> (i32, i32) {
    %c0_i32 = arith.constant 0 : i32
    %c0_i32_0 = arith.constant 0 : i32
    %c0_i32_1 = arith.constant 0 : i32
    return %c0_i32, %c0_i32_0 : i32, i32
  }
  func.func @transform_5(%arg0: i32) -> (i32, i32) {
    %c0_i32 = arith.constant 0 : i32
    %c0_i32_0 = arith.constant 0 : i32
    %c0_i32_1 = arith.constant 0 : i32
    return %c0_i32, %c0_i32_0 : i32, i32
  }
  func.func @transform_6(%arg0: i32) -> (i32, i32) {
    %c0_i32 = arith.constant 0 : i32
    %c0_i32_0 = arith.constant 0 : i32
    %c0_i32_1 = arith.constant 0 : i32
    return %c0_i32, %c0_i32_0 : i32, i32
  }
  func.func @transform_7(%arg0: i32) -> (i32, i32) {
    %c0_i32 = arith.constant 0 : i32
    %c0_i32_0 = arith.constant 0 : i32
    %c0_i32_1 = arith.constant 0 : i32
    return %c0_i32, %c0_i32_0 : i32, i32
  }
  func.func @transform_8(%arg0: i32) -> (i32, i32) {
    %c0_i32 = arith.constant 0 : i32
    %c0_i32_0 = arith.constant 0 : i32
    %c0_i32_1 = arith.constant 0 : i32
    return %c0_i32, %c0_i32_0 : i32, i32
  }
  func.func @transform_9(%arg0: i32) -> (i32, i32) {
    %c0_i32 = arith.constant 0 : i32
    %c0_i32_0 = arith.constant 0 : i32
    %c0_i32_1 = arith.constant 0 : i32
    return %c0_i32, %c0_i32_0 : i32, i32
  }
  func.func @transform_10(%arg0: i32) -> (i32, i32) {
    %c0_i32 = arith.constant 0 : i32
    %c0_i32_0 = arith.constant 0 : i32
    %c0_i32_1 = arith.constant 0 : i32
    return %c0_i32, %c0_i32_0 : i32, i32
  }
  func.func @transform_11(%arg0: i32) -> (i32, i32) {
    %c0_i32 = arith.constant 0 : i32
    %c0_i32_0 = arith.constant 0 : i32
    %c0_i32_1 = arith.constant 0 : i32
    return %c0_i32, %c0_i32_0 : i32, i32
  }
}

</mosaic_0001>

<llo_original>
// kernel: tpu_custom_call.1
$region0: #{tpu_custom_call.1}
  #allocation0 [shape = 'u32[]', space=smem, size = 0x4, offset = 0x4, fixed_abs, tag = 'smem constant byte address 0x4 - core index']
  #allocation1 [shape = 'u32[72,128]{1,0:T(1,128)}', space=vmem, size = 0x9000, scoped, tag = 'internal scratch']
  #allocation2 [shape = 'f32[8,5]{1,0:T(8,128)}', space=vmem, size = 0x1000, scoped, tag = 'scratch operand']
  #allocation3 [shape = 'f32[8,3]{1,0:T(8,128)}', space=vmem, size = 0x1000, scoped, tag = 'scratch operand']
  %s0 = inlined_call_operand.vmem [shape: s32[1,128], index: 0, kind: input, shape index: {}]
  %s1 = inlined_call_operand.vmem [shape: s32[1,128], index: 1, kind: input, shape index: {}]
  %s2 = inlined_call_operand.vmem [shape: f32[128,5], index: 2, kind: input, shape index: {}]
  %s3 = inlined_call_operand.vmem [shape: f32[128,3], index: 3, kind: input, shape index: {}]
  %s4 = inlined_call_operand.vmem [shape: f32[8,4], index: 4, kind: input, shape index: {}]
  %s5 = inlined_call_operand.vmem [shape: f32[5,128], index: 5, kind: input, shape index: {}]
  %s6 = inlined_call_operand.vmem [shape: f32[3,128], index: 6, kind: input, shape index: {}]
  %s7 = inlined_call_operand.vmem [shape: f32[4,128], index: 7, kind: input, shape index: {}]
  %s8 = inlined_call_operand.vmem [shape: f32[1,128], index: 8, kind: input, shape index: {}]
  %s9 = inlined_call_operand.vmem [shape: f32[128,128], index: 9, kind: input, shape index: {}]
  %s10 = inlined_call_operand.vmem [shape: f32[1,128], index: 10, kind: input, shape index: {}]
  %s11 = inlined_call_operand.hbm [shape: f32[8,128], index: 11, kind: output, shape index: {}]
  %s12 = sld [smem:[#allocation0]]
  $region62: #{tpu_custom_call.1} parent=0
    _
  %s14 = ssub.s32 1, %s12
  %s15 = scalar_select 0, %s14, %s12
  $region1: #{tpu_custom_call.1} parent=0
    #allocation4 [shape = 'u8[4096]{0}', space=vmem, size = 0x1000, scoped, tag = 'output window, operand 0, single buffered']
    #allocation5 [shape = 's32[1]{0}', space=sflag, size = 0x4, scoped, tag = 'scoped memory for tpu_custom_call.1']
    %16 = vsyncpa [#allocation5], 0
    // Predicated region
    $region2: #{tpu_custom_call.1} parent=1 // pred_check
      _
    $region3: #{tpu_custom_call.1} parent=1 // pred_check_branch
      %18 = sbr.rel (0) target = $region5
    $region4: #{tpu_custom_call.1} parent=1 // pred_region
      _
    $region5: #{tpu_custom_call.1} parent=1 // pred_fallthru
      _
    // Predicated region
    $region6: #{tpu_custom_call.1} parent=1 // pred_check
      _
    $region7: #{tpu_custom_call.1} parent=1 // pred_check_branch
      %20 = sbr.rel (0) target = $region9
    $region8: #{tpu_custom_call.1} parent=1 // pred_region
      _
    $region9: #{tpu_custom_call.1} parent=1 // pred_fallthru
      _
    // Predicated region
    $region10: #{tpu_custom_call.1} parent=1 // pred_check
      _
    $region11: #{tpu_custom_call.1} parent=1 // pred_check_branch
      %22 = sbr.rel (0) target = $region13
    $region12: #{tpu_custom_call.1} parent=1 // pred_region
      _
    $region13: #{tpu_custom_call.1} parent=1 // pred_fallthru
      _
    // Predicated region
    $region14: #{tpu_custom_call.1} parent=1 // pred_check
      _
    $region15: #{tpu_custom_call.1} parent=1 // pred_check_branch
      %24 = sbr.rel (0) target = $region17
    $region16: #{tpu_custom_call.1} parent=1 // pred_region
      _
    $region17: #{tpu_custom_call.1} parent=1 // pred_fallthru
      _
    // Predicated region
    $region18: #{tpu_custom_call.1} parent=1 // pred_check
      _
    $region19: #{tpu_custom_call.1} parent=1 // pred_check_branch
      %26 = sbr.rel (0) target = $region21
    $region20: #{tpu_custom_call.1} parent=1 // pred_region
      _
    $region21: #{tpu_custom_call.1} parent=1 // pred_fallthru
      _
    // Predicated region
    $region22: #{tpu_custom_call.1} parent=1 // pred_check
      _
    $region23: #{tpu_custom_call.1} parent=1 // pred_check_branch
      %28 = sbr.rel (0) target = $region25
    $region24: #{tpu_custom_call.1} parent=1 // pred_region
      _
    $region25: #{tpu_custom_call.1} parent=1 // pred_fallthru
      _
    // Predicated region
    $region26: #{tpu_custom_call.1} parent=1 // pred_check
      _
    $region27: #{tpu_custom_call.1} parent=1 // pred_check_branch
      %30 = sbr.rel (0) target = $region29
    $region28: #{tpu_custom_call.1} parent=1 // pred_region
      _
    $region29: #{tpu_custom_call.1} parent=1 // pred_fallthru
      _
    // Predicated region
    $region30: #{tpu_custom_call.1} parent=1 // pred_check
      _
    $region31: #{tpu_custom_call.1} parent=1 // pred_check_branch
      %32 = sbr.rel (0) target = $region33
    $region32: #{tpu_custom_call.1} parent=1 // pred_region
      _
    $region33: #{tpu_custom_call.1} parent=1 // pred_fallthru
      _
    // Predicated region
    $region34: #{tpu_custom_call.1} parent=1 // pred_check
      _
    $region35: #{tpu_custom_call.1} parent=1 // pred_check_branch
      %34 = sbr.rel (0) target = $region37
    $region36: #{tpu_custom_call.1} parent=1 // pred_region
      _
    $region37: #{tpu_custom_call.1} parent=1 // pred_fallthru
      _
    // Predicated region
    $region38: #{tpu_custom_call.1} parent=1 // pred_check
      _
    $region39: #{tpu_custom_call.1} parent=1 // pred_check_branch
      %36 = sbr.rel (0) target = $region41
    $region40: #{tpu_custom_call.1} parent=1 // pred_region
      _
    $region41: #{tpu_custom_call.1} parent=1 // pred_fallthru
      _
    // Predicated region
    $region42: #{tpu_custom_call.1} parent=1 // pred_check
      _
    $region43: #{tpu_custom_call.1} parent=1 // pred_check_branch
      %38 = sbr.rel (0) target = $region45
    $region44: #{tpu_custom_call.1} parent=1 // pred_region
      _
    $region45: #{tpu_custom_call.1} parent=1 // pred_fallthru
      _
    %p39 = scmp.eq.s32.totalorder 0, 0
    // Predicated region
    $region46: #{tpu_custom_call.1} parent=1 // pred_check
      %p40 = pneg %p39
    $region47: #{tpu_custom_call.1} parent=1 // pred_check_branch
      %42 = sbr.rel (%p40) target = $region49
    $region48: #{tpu_custom_call.1} parent=1 // pred_region
      %vm43 = vcmask 39936
      %44 = vst.msk [vmem:[#allocation2] sm:$0xff] %vm43, 0.0
      %vm45 = vcmask 23552
      %46 = vst.msk [vmem:[#allocation3] sm:$0xff] %vm45, 0.0
    $region49: #{tpu_custom_call.1} parent=1 // pred_fallthru
      _
    %v47 = vlaneseq
    %v48 = vshrl.u32 %v47, 7
    %v49 = vld [vmem:[%s0] sm:$0x1]
    %v50 = vperm.slane %v49, 0
    %vm51 = vcmp.eq.s32.totalorder %v48, %v50
    %v52 = vsel %vm51, 1, 0
    %v53 = vcvt.s32.f32 %v52
    %v54 = vld [vmem:[#allocation2] sm:$0xff]
    %v55 = vld [vmem:[%s2] sm:$0xff]
    %v56 = vld [vmem:[%s2 + $0x8] sm:$0xff]
    %v57 = vld [vmem:[%s2 + $0x10] sm:$0xff]
    %v58 = vld [vmem:[%s2 + $0x18] sm:$0xff]
    %v59 = vld [vmem:[%s2 + $0x20] sm:$0xff]
    %v60 = vld [vmem:[%s2 + $0x28] sm:$0xff]
    %v61 = vld [vmem:[%s2 + $0x30] sm:$0xff]
    %v62 = vld [vmem:[%s2 + $0x38] sm:$0xff]
    %v63 = vld [vmem:[%s2 + $0x40] sm:$0xff]
    %v64 = vld [vmem:[%s2 + $0x48] sm:$0xff]
    %v65 = vld [vmem:[%s2 + $0x50] sm:$0xff]
    %v66 = vld [vmem:[%s2 + $0x58] sm:$0xff]
    %v67 = vld [vmem:[%s2 + $0x60] sm:$0xff]
    %v68 = vld [vmem:[%s2 + $0x68] sm:$0xff]
    %v69 = vld [vmem:[%s2 + $0x70] sm:$0xff]
    %v70 = vld [vmem:[%s2 + $0x78] sm:$0xff]
    %71 = vmatpush.msra.mxu0 %v70
    %72 = vmatpush.msra.mxu0 %v69
    %73 = vmatpush.msra.mxu0 %v68
    %74 = vmatpush.msra.mxu0 %v67
    %75 = vmatpush.msra.mxu0 %v66
    %76 = vmatpush.msra.mxu0 %v65
    %77 = vmatpush.msra.mxu0 %v64
    %78 = vmatpush.msra.mxu0 %v63
    %79 = vmatpush.msra.mxu0 %v62
    %80 = vmatpush.msra.mxu0 %v61
    %81 = vmatpush.msra.mxu0 %v60
    %82 = vmatpush.msra.mxu0 %v59
    %83 = vmatpush.msra.mxu0 %v58
    %84 = vmatpush.msra.mxu0 %v57
    %85 = vmatpush.msra.mxu0 %v56
    %86 = vmatpush.msra.mxu0 %v55
    %87 = vmatmul.f32.gmra.mxu0 %v53
    %v88 = vpop.f32.mrf.mxu0
    %v89 = vadd.f32 0.0, %v88
    %90 = vdwg.mxu0
    %v91 = vadd.f32 %v54, %v89
    %vm92 = vcmask 39936
    %93 = vst.msk [vmem:[#allocation2] sm:$0xff] %vm92, %v91
    %v94 = vld [vmem:[%s1] sm:$0x1]
    %v95 = vperm.slane %v94, 0
    %vm96 = vcmp.eq.s32.totalorder %v48, %v95
    %v97 = vsel %vm96, 1, 0
    %v98 = vcvt.s32.f32 %v97
    %v99 = vld [vmem:[#allocation3] sm:$0xff]
    %v100 = vld [vmem:[%s3] sm:$0xff]
    %v101 = vld [vmem:[%s3 + $0x8] sm:$0xff]
    %v102 = vld [vmem:[%s3 + $0x10] sm:$0xff]
    %v103 = vld [vmem:[%s3 + $0x18] sm:$0xff]
    %v104 = vld [vmem:[%s3 + $0x20] sm:$0xff]
    %v105 = vld [vmem:[%s3 + $0x28] sm:$0xff]
    %v106 = vld [vmem:[%s3 + $0x30] sm:$0xff]
    %v107 = vld [vmem:[%s3 + $0x38] sm:$0xff]
    %v108 = vld [vmem:[%s3 + $0x40] sm:$0xff]
    %v109 = vld [vmem:[%s3 + $0x48] sm:$0xff]
    %v110 = vld [vmem:[%s3 + $0x50] sm:$0xff]
    %v111 = vld [vmem:[%s3 + $0x58] sm:$0xff]
    %v112 = vld [vmem:[%s3 + $0x60] sm:$0xff]
    %v113 = vld [vmem:[%s3 + $0x68] sm:$0xff]
    %v114 = vld [vmem:[%s3 + $0x70] sm:$0xff]
    %v115 = vld [vmem:[%s3 + $0x78] sm:$0xff]
    %116 = vmatpush.msra.mxu0 %v115
    %117 = vmatpush.msra.mxu0 %v114
    %118 = vmatpush.msra.mxu0 %v113
    %119 = vmatpush.msra.mxu0 %v112
    %120 = vmatpush.msra.mxu0 %v111
    %121 = vmatpush.msra.mxu0 %v110
    %122 = vmatpush.msra.mxu0 %v109
    %123 = vmatpush.msra.mxu0 %v108
    %124 = vmatpush.msra.mxu0 %v107
    %125 = vmatpush.msra.mxu0 %v106
    %126 = vmatpush.msra.mxu0 %v105
    %127 = vmatpush.msra.mxu0 %v104
    %128 = vmatpush.msra.mxu0 %v103
    %129 = vmatpush.msra.mxu0 %v102
    %130 = vmatpush.msra.mxu0 %v101
    %131 = vmatpush.msra.mxu0 %v100
    %132 = vmatmul.f32.gmra.mxu0 %v98
    %v133 = vpop.f32.mrf.mxu0
    %v134 = vadd.f32 0.0, %v133
    %135 = vdwg.mxu0
    %v136 = vadd.f32 %v99, %v134
    %vm137 = vcmask 23552
    %138 = vst.msk [vmem:[#allocation3] sm:$0xff] %vm137, %v136
    // Predicated region
    $region50: #{tpu_custom_call.1} parent=1 // pred_check
      %p139 = pneg %p39
    $region51: #{tpu_custom_call.1} parent=1 // pred_check_branch
      %141 = sbr.rel (%p139) target = $region53
    $region52: #{tpu_custom_call.1} parent=1 // pred_region
      %v142 = vld [vmem:[#allocation2] sm:$0xff]
      %v143 = vld [vmem:[%s5] sm:$0x1f]
      %v144 = vld [vmem:[#allocation3] sm:$0xff]
      %v145 = vld [vmem:[%s6] sm:$0x7]
      %v147 = vsel %vm137, %v144, 0
      %vm149 = vcmask 1042432
      %v151 = vsel %vm149, %v145, 0
      %153 = vmatpush.msra.mxu0 0.0
      %154 = vmatpush.msra.mxu0 0.0
      %155 = vmatpush.msra.mxu0 0.0
      %156 = vmatpush.msra.mxu0 0.0
      %157 = vmatpush.msra.mxu0 0.0
      %158 = vmatpush.msra.mxu0 0.0
      %159 = vmatpush.msra.mxu0 0.0
      %160 = vmatpush.msra.mxu0 0.0
      %161 = vmatpush.msra.mxu0 0.0
      %162 = vmatpush.msra.mxu0 0.0
      %163 = vmatpush.msra.mxu0 0.0
      %164 = vmatpush.msra.mxu0 0.0
      %165 = vmatpush.msra.mxu0 0.0
      %166 = vmatpush.msra.mxu0 0.0
      %167 = vmatpush.msra.mxu0 0.0
      %168 = vmatpush.msra.mxu0 %v151
      %169 = vmatmul.f32.gmra.mxu0 %v147
      %v170 = vpop.f32.mrf.mxu0
      %v171 = vadd.f32 0.0, %v170
      %172 = vdwg.mxu0
      %v174 = vsel %vm92, %v142, 0
      %vm176 = vcmask 1044480
      %v178 = vsel %vm176, %v143, 0
      %180 = vmatpush.msra.mxu0 0.0
      %181 = vmatpush.msra.mxu0 0.0
      %182 = vmatpush.msra.mxu0 0.0
      %183 = vmatpush.msra.mxu0 0.0
      %184 = vmatpush.msra.mxu0 0.0
      %185 = vmatpush.msra.mxu0 0.0
      %186 = vmatpush.msra.mxu0 0.0
      %187 = vmatpush.msra.mxu0 0.0
      %188 = vmatpush.msra.mxu0 0.0
      %189 = vmatpush.msra.mxu0 0.0
      %190 = vmatpush.msra.mxu0 0.0
      %191 = vmatpush.msra.mxu0 0.0
      %192 = vmatpush.msra.mxu0 0.0
      %193 = vmatpush.msra.mxu0 0.0
      %194 = vmatpush.msra.mxu0 0.0
      %195 = vmatpush.msra.mxu0 %v178
      %196 = vmatmul.f32.gmra.mxu0 %v174
      %v197 = vpop.f32.mrf.mxu0
      %v198 = vadd.f32 %v171, %v197
      %199 = vdwg.mxu0
      %v200 = vld [vmem:[%s4] sm:$0xff]
      %v201 = vld [vmem:[%s7] sm:$0xf]
      %vm202 = vcmask 31744
      %v204 = vsel %vm202, %v200, 0
      %vm206 = vcmask 1043456
      %v208 = vsel %vm206, %v201, 0
      %210 = vmatpush.msra.mxu0 0.0
      %211 = vmatpush.msra.mxu0 0.0
      %212 = vmatpush.msra.mxu0 0.0
      %213 = vmatpush.msra.mxu0 0.0
      %214 = vmatpush.msra.mxu0 0.0
      %215 = vmatpush.msra.mxu0 0.0
      %216 = vmatpush.msra.mxu0 0.0
      %217 = vmatpush.msra.mxu0 0.0
      %218 = vmatpush.msra.mxu0 0.0
      %219 = vmatpush.msra.mxu0 0.0
      %220 = vmatpush.msra.mxu0 0.0
      %221 = vmatpush.msra.mxu0 0.0
      %222 = vmatpush.msra.mxu0 0.0
      %223 = vmatpush.msra.mxu0 0.0
      %224 = vmatpush.msra.mxu0 0.0
      %225 = vmatpush.msra.mxu0 %v208
      %226 = vmatmul.f32.gmra.mxu0 %v204
      %v227 = vpop.f32.mrf.mxu0
      %v228 = vadd.f32 0.0, %v227
      %229 = vdwg.mxu0
      %v230 = vadd.f32 %v198, %v228
      %v231 = vld [vmem:[%s8] sm:$0x1]
      %v233 = vperm.slane %v231, 0
      %v235 = vadd.f32 %v230, %v233
      %v236 = vmax.f32 %v235, 0.0
      %v237 = vld [vmem:[%s9] sm:$0xff]
      %v238 = vld [vmem:[%s9 + $0x8] sm:$0xff]
      %v239 = vld [vmem:[%s9 + $0x10] sm:$0xff]
      %v240 = vld [vmem:[%s9 + $0x18] sm:$0xff]
      %v241 = vld [vmem:[%s9 + $0x20] sm:$0xff]
      %v242 = vld [vmem:[%s9 + $0x28] sm:$0xff]
      %v243 = vld [vmem:[%s9 + $0x30] sm:$0xff]
      %v244 = vld [vmem:[%s9 + $0x38] sm:$0xff]
      %v245 = vld [vmem:[%s9 + $0x40] sm:$0xff]
      %v246 = vld [vmem:[%s9 + $0x48] sm:$0xff]
      %v247 = vld [vmem:[%s9 + $0x50] sm:$0xff]
      %v248 = vld [vmem:[%s9 + $0x58] sm:$0xff]
      %v249 = vld [vmem:[%s9 + $0x60] sm:$0xff]
      %v250 = vld [vmem:[%s9 + $0x68] sm:$0xff]
      %v251 = vld [vmem:[%s9 + $0x70] sm:$0xff]
      %v252 = vld [vmem:[%s9 + $0x78] sm:$0xff]
      %v253 = vld [vmem:[%s10] sm:$0x1]
      %v255 = vperm.slane %v253, 0
      %257 = vmatpush.msra.mxu0 %v252
      %258 = vmatpush.msra.mxu0 %v251
      %259 = vmatpush.msra.mxu0 %v250
      %260 = vmatpush.msra.mxu0 %v249
      %261 = vmatpush.msra.mxu0 %v248
      %262 = vmatpush.msra.mxu0 %v247
      %263 = vmatpush.msra.mxu0 %v246
      %264 = vmatpush.msra.mxu0 %v245
      %265 = vmatpush.msra.mxu0 %v244
      %266 = vmatpush.msra.mxu0 %v243
      %267 = vmatpush.msra.mxu0 %v242
      %268 = vmatpush.msra.mxu0 %v241
      %269 = vmatpush.msra.mxu0 %v240
      %270 = vmatpush.msra.mxu0 %v239
      %271 = vmatpush.msra.mxu0 %v238
      %272 = vmatpush.msra.mxu0 %v237
      %273 = vmatmul.f32.gmra.mxu0 %v236
      %v274 = vpop.f32.mrf.mxu0
      %v275 = vadd.f32 %v255, %v274
      %276 = vdwg.mxu0
      %v277 = vmax.f32 %v275, 0.0
      %278 = vst [vmem:[#allocation4] sm:$0xff] %v277
    $region53: #{tpu_custom_call.1} parent=1 // pred_fallthru
      _
    // Predicated region
    $region54: #{tpu_custom_call.1} parent=1 // pred_check
      _
    $region55: #{tpu_custom_call.1} parent=1 // pred_check_branch
      %280 = sbr.rel (0) target = $region57
    $region56: #{tpu_custom_call.1} parent=1 // pred_region
      %282 = vsyncadd [#allocation5], 0
      %s284 = sshll.u32 [#allocation4], 4
      %s285 = int_to_ptr.vmem [resolvable:$true] %s284
      %s286 = sshll.u32 %s11, 4
      %s287 = int_to_ptr.hbm [resolvable:$true] %s286
      %289 = dma.vmem_to_hbm [thread:$0]  %s285, 128, %s287, [#allocation5]
    $region57: #{tpu_custom_call.1} parent=1 // pred_fallthru
      _
    // Predicated region
    $region58: #{tpu_custom_call.1} parent=1 // pred_check
      _
    $region59: #{tpu_custom_call.1} parent=1 // pred_check_branch
      %291 = sbr.rel (0) target = $region61
    $region60: #{tpu_custom_call.1} parent=1 // pred_region
      %293 = dma.done [#allocation5], 128
    $region61: #{tpu_custom_call.1} parent=1 // pred_fallthru
      _
    %294 = vsyncpa [#allocation5], 1

</llo_original>
